<compile_context>
chip_gen: v7x
topology: tpu7x:2x2x1
jax: 0.10.0
libtpu: 0.0.40
codegen_flags: <defaults>
</compile_context>

<pallas_src>
import functools

import jax
import jax.numpy as jnp
from jax.experimental import pallas as pl
from jax.experimental.pallas import tpu as pltpu

LN_EPS = 1e-5                 # PyTorch nn.LayerNorm default
_MAX_UNROLL_LAYERS = 16       # resident path statically unrolls up to this depth


def _round_up(x, m):
    return ((x + m - 1) // m) * m


@functools.lru_cache(maxsize=1)
def _vmem_capacity_bytes():
    """Per-core VMEM capacity; conservative 64 MiB (v7x) fallback."""
    try:
        info = pltpu.get_tpu_info()
        for attr in ("vmem_capacity_bytes", "vmem_size_bytes", "vmem_bytes"):
            v = getattr(info, attr, None)
            if isinstance(v, int) and v > 0:
                return int(v)
    except Exception:
        pass
    return 64 << 20


# ----------------------------------------------------------------------------- shared layer math
def _layer_step(x, w, b, g, beta, inv_c):
    """One {LayerNorm -> Linear -> ReLU -> +residual} step on an f32 row tile.

    x: (TN, Cp) f32, w: (Cp, Cp) matmul dtype (already transposed: x @ W^T form),
    b/g/beta: (1, Cp) f32.  Padded feature columns are zero on entry and stay
    zero: gamma/beta/W/b are zero-padded, so they contribute nothing to the LN
    sums or the matmul, and the residual keeps them at zero.
    """
    mean = jnp.sum(x, axis=-1, keepdims=True) * inv_c
    # One-pass (biased) variance; padded cols contribute 0 to both sums.
    var = jnp.maximum(jnp.sum(x * x, axis=-1, keepdims=True) * inv_c - mean * mean, 0.0)
    xn = (x - mean) * jax.lax.rsqrt(var + LN_EPS) * g + beta
    h = jnp.dot(xn.astype(w.dtype), w, preferred_element_type=jnp.float32) + b
    return jnp.maximum(h, 0.0) + x


# ----------------------------------------------------------------------------- kernels
def _resident_kernel(x_ref, w_ref, b_ref, g_ref, beta_ref, o_ref, *,
                     c_actual, layer_num):
    """All layers fused; whole weight stack resident in VMEM (small L / Cp)."""
    x = x_ref[...].astype(jnp.float32)
    inv_c = jnp.float32(1.0 / c_actual)
    for l in range(layer_num):                       # static unroll (L <= _MAX_UNROLL_LAYERS)
        x = _layer_step(x, w_ref[l], b_ref[l], g_ref[l], beta_ref[l], inv_c)
    o_ref[...] = x.astype(o_ref.dtype)


def _streaming_kernel(x_ref, w_ref, b_ref, g_ref, beta_ref, o_ref, acc_ref, *,
                      c_actual):
    """Layer grid axis: per-layer weights streamed (double-buffered DMA),
    activation tile carried across layer steps in a VMEM f32 accumulator."""
    l = pl.program_id(1)

    @pl.when(l == 0)
    def _():
        acc_ref[...] = x_ref[...].astype(jnp.float32)

    inv_c = jnp.float32(1.0 / c_actual)
    acc_ref[...] = _layer_step(acc_ref[...], w_ref[0], b_ref[0], g_ref[0],
                               beta_ref[0], inv_c)

    @pl.when(l == pl.num_programs(1) - 1)
    def _():
        o_ref[...] = acc_ref[...].astype(o_ref.dtype)


# ----------------------------------------------------------------------------- pallas_call wrappers
def _call_resident(x2d, w_t, b, gamma, beta, *, c_actual, tile_n, layer_num, vmem_limit):
    n_pad, c_pad = x2d.shape
    kernel = functools.partial(_resident_kernel, c_actual=c_actual, layer_num=layer_num)
    # Grid-invariant operands: whole array resident in VMEM (no per-step DMA).
    vmem_full = pl.BlockSpec(memory_space=pltpu.MemorySpace.VMEM)
    return pl.pallas_call(
        kernel,
        out_shape=jax.ShapeDtypeStruct((n_pad, c_pad), x2d.dtype),
        grid_spec=pltpu.PrefetchScalarGridSpec(
            num_scalar_prefetch=0,
            grid=(n_pad // tile_n,),
            in_specs=[
                pl.BlockSpec((tile_n, c_pad), lambda i: (i, 0)),  # activation rows
                vmem_full,   # stacked W^T   (L, Cp, Cp)
                vmem_full,   # stacked bias  (L, 1, Cp)
                vmem_full,   # stacked gamma (L, 1, Cp)
                vmem_full,   # stacked beta  (L, 1, Cp)
            ],
            out_specs=pl.BlockSpec((tile_n, c_pad), lambda i: (i, 0)),
        ),
        compiler_params=pltpu.CompilerParams(
            dimension_semantics=("parallel",),
            vmem_limit_bytes=vmem_limit),
    )(x2d, w_t, b, gamma, beta)


def _call_streaming(x2d, w_t, b, gamma, beta, *, c_actual, tile_n, layer_num, vmem_limit):
    n_pad, c_pad = x2d.shape
    kernel = functools.partial(_streaming_kernel, c_actual=c_actual)
    return pl.pallas_call(
        kernel,
        out_shape=jax.ShapeDtypeStruct((n_pad, c_pad), x2d.dtype),
        grid_spec=pltpu.PrefetchScalarGridSpec(
            num_scalar_prefetch=0,
            grid=(n_pad // tile_n, layer_num),        # layer axis innermost
            in_specs=[
                # x block index is invariant in l -> fetched once per row tile.
                pl.BlockSpec((tile_n, c_pad), lambda i, l: (i, 0)),
                pl.BlockSpec((1, c_pad, c_pad), lambda i, l: (l, 0, 0)),  # W^T (per layer)
                pl.BlockSpec((1, 1, c_pad), lambda i, l: (l, 0, 0)),      # bias
                pl.BlockSpec((1, 1, c_pad), lambda i, l: (l, 0, 0)),      # gamma
                pl.BlockSpec((1, 1, c_pad), lambda i, l: (l, 0, 0)),      # beta
            ],
            out_specs=pl.BlockSpec((tile_n, c_pad), lambda i, l: (i, 0)),
            scratch_shapes=[pltpu.VMEM((tile_n, c_pad), jnp.float32)],    # activation carry
        ),
        compiler_params=pltpu.CompilerParams(
            dimension_semantics=("parallel", "arbitrary"),
            vmem_limit_bytes=vmem_limit),
    )(x2d, w_t, b, gamma, beta)


# ----------------------------------------------------------------------------- params
def init_skip_connection_params(key, ch_num, layer_num, dtype=jnp.float32):
    """Deterministic synthetic params matching the PyTorch module's shapes."""
    params = []
    for _ in range(layer_num):
        key, kw, kb = jax.random.split(key, 3)
        bound = 1.0 / jnp.sqrt(ch_num)
        w = jax.random.uniform(kw, (ch_num, ch_num), dtype, -bound, bound)  # (out, in)
        b = jax.random.uniform(kb, (ch_num,), dtype, -bound, bound)
        gamma = jnp.ones((ch_num,), dtype)
        beta = jnp.zeros((ch_num,), dtype)
        params.append({"w": w, "b": b, "gamma": gamma, "beta": beta})
    return params


def pack_skip_connection_params(params, *, matmul_dtype=jnp.bfloat16):
    """Pre-transpose / zero-pad / stack params ONCE (outside the jitted forward)."""
    c = params[0]["w"].shape[0]
    c_pad = max(128, _round_up(c, 128))          # lane-dense feature dim
    layer_num = len(params)

    w_t = jnp.zeros((layer_num, c_pad, c_pad), matmul_dtype)
    b = jnp.zeros((layer_num, 1, c_pad), jnp.float32)
    g = jnp.zeros((layer_num, 1, c_pad), jnp.float32)
    beta = jnp.zeros((layer_num, 1, c_pad), jnp.float32)
    for l, p in enumerate(params):
        w_t = w_t.at[l, :c, :c].set(p["w"].T.astype(matmul_dtype))   # x @ W^T form
        b = b.at[l, 0, :c].set(p["b"].astype(jnp.float32))
        g = g.at[l, 0, :c].set(p["gamma"].astype(jnp.float32))
        beta = beta.at[l, 0, :c].set(p["beta"].astype(jnp.float32))
    return {"w_t": w_t, "b": b, "gamma": g, "beta": beta}


# ----------------------------------------------------------------------------- forward
@functools.partial(jax.jit, static_argnames=("tile_n", "force_streaming"))
def skip_connection_forward(x, w_t, b, gamma, beta, *, tile_n=512, force_streaming=False):
    orig_shape = x.shape
    c = orig_shape[-1]
    layer_num, _, c_pad = w_t.shape

    x2d = x.reshape(-1, c)
    n = x2d.shape[0]

    # Row tile: large (default 512) for HBM-roofline efficiency, multiple of 8,
    # and split so the row grid has >= 2 blocks whenever n allows (keeps both
    # v7x TensorCores busy under the "parallel" row axis).
    n8 = _round_up(max(n, 1), 8)
    tile = _round_up(min(tile_n, n8), 8)
    if tile >= n8 and n8 >= 16:
        tile = _round_up(n8 // 2, 8)
    n_pad = _round_up(n8, tile)

    # Zero-pad rows (ragged last block) and feature columns (lane density).
    x2d = jnp.pad(x2d, ((0, n_pad - n), (0, c_pad - c)))

    # Generation-aware VMEM budget (v5e/v6e: 128 MiB, v7x: 64 MiB per core).
    capacity = _vmem_capacity_bytes()
    vmem_limit = int(min(0.8 * capacity, 112 << 20))

    # Resident path only if the whole weight stack + double-buffered activation
    # tiles + f32 temporaries fit comfortably; otherwise stream weights per layer.
    w_bytes = w_t.size * w_t.dtype.itemsize
    small_bytes = (b.size + gamma.size + beta.size) * 4
    act_bytes = 4 * tile * c_pad * x2d.dtype.itemsize          # in + out, double-buffered
    headroom = 6 * tile * c_pad * 4 + (2 << 20)                # f32 temporaries / spills
    resident_need = w_bytes + small_bytes + act_bytes + headroom
    use_resident = (not force_streaming
                    and layer_num <= _MAX_UNROLL_LAYERS
                    and resident_need <= int(0.75 * vmem_limit))

    if use_resident:
        out = _call_resident(x2d, w_t, b, gamma, beta, c_actual=c, tile_n=tile,
                             layer_num=layer_num, vmem_limit=vmem_limit)
    else:
        out = _call_streaming(x2d, w_t, b, gamma, beta, c_actual=c, tile_n=tile,
                              layer_num=layer_num, vmem_limit=vmem_limit)
    return out[:n, :c].reshape(orig_shape).astype(x.dtype)


# ----------------------------------------------------------------------------- reference
def _reference_forward(x, params, *, matmul_dtype=jnp.float32):
    """Pure-JAX reference mirroring the PyTorch module."""
    for p in params:
        y = x
        mean = jnp.mean(x, axis=-1, keepdims=True)
        var = jnp.mean((x - mean) ** 2, axis=-1, keepdims=True)
        xn = (x - mean) * jax.lax.rsqrt(var + LN_EPS) * p["gamma"] + p["beta"]
        h = jnp.dot(xn.astype(matmul_dtype), p["w"].T.astype(matmul_dtype),
                    preferred_element_type=jnp.float32) + p["b"]
        x = jnp.maximum(h, 0.0) + y
    return x


# ----------------------------------------------------------------------------- main
if __name__ == "__main__":
    key = jax.random.PRNGKey(0)

    # ---- Case 1: base config (ch=32, 3 layers) -> resident-weights path. ----
    ch_num, layer_num = 32, 3
    key, kx = jax.random.split(key)
    x = jax.random.normal(kx, (2, 8, ch_num), jnp.float32)
    params = init_skip_connection_params(key, ch_num, layer_num)
    packed = pack_skip_connection_params(params, matmul_dtype=jnp.bfloat16)

    out = jax.block_until_ready(skip_connection_forward(
        x, packed["w_t"], packed["b"], packed["gamma"], packed["beta"]))
    assert out.shape == x.shape
    ref_bf16 = _reference_forward(x, params, matmul_dtype=jnp.bfloat16)
    ref_f32 = _reference_forward(x, params, matmul_dtype=jnp.float32)
    assert jnp.allclose(out, ref_bf16, atol=1e-2, rtol=1e-2), "mismatch vs bf16 reference"
    assert jnp.allclose(out, ref_f32, atol=5e-2, rtol=5e-2), "mismatch vs f32 reference"

    # ---- Case 2: ragged row count -> row padding + multi-block row grid. ----
    key, kx2 = jax.random.split(key)
    x2 = jax.random.normal(kx2, (4, 100, ch_num), jnp.float32)
    out2 = jax.block_until_ready(skip_connection_forward(
        x2, packed["w_t"], packed["b"], packed["gamma"], packed["beta"]))
    ref2 = _reference_forward(x2, params, matmul_dtype=jnp.bfloat16)
    assert out2.shape == x2.shape
    assert jnp.allclose(out2, ref2, atol=1e-2, rtol=1e-2), "mismatch (ragged case)"

    # ---- Case 3: weight-streaming path (layer grid axis, same params). ----
    out3 = jax.block_until_ready(skip_connection_forward(
        x, packed["w_t"], packed["b"], packed["gamma"], packed["beta"],
        force_streaming=True))
    assert jnp.allclose(out3, ref_bf16, atol=1e-2, rtol=1e-2), "streaming: mismatch vs ref"
    assert jnp.allclose(out3, out, atol=1e-3, rtol=1e-3), "streaming != resident"

    # ---- Case 4: deeper stack (10 layers): resident-unrolled vs streaming. ----
    key, kp4, kx4 = jax.random.split(key, 3)
    params4 = init_skip_connection_params(kp4, ch_num, 10)
    packed4 = pack_skip_connection_params(params4, matmul_dtype=jnp.bfloat16)
    x4 = jax.random.normal(kx4, (3, 40, ch_num), jnp.float32)
    out4_res = jax.block_until_ready(skip_connection_forward(
        x4, packed4["w_t"], packed4["b"], packed4["gamma"], packed4["beta"]))
    out4_str = jax.block_until_ready(skip_connection_forward(
        x4, packed4["w_t"], packed4["b"], packed4["gamma"], packed4["beta"],
        force_streaming=True))
    assert jnp.allclose(out4_res, out4_str, atol=1e-3, rtol=1e-3), "deep: streaming != resident"
    ref4 = _reference_forward(x4, params4, matmul_dtype=jnp.bfloat16)
    # Loose sanity bound: bf16 rounding differences compound over 10 residual layers.
    assert jnp.allclose(out4_res, ref4, atol=1e-1, rtol=1e-1), "deep: mismatch vs reference"
    assert bool(jnp.all(jnp.isfinite(out4_res))), "deep: non-finite output"

    print("KERNEL_OK")
</pallas_src>

<mosaic_0001>
module attributes {stable_mosaic.version = 11 : i64} {
  func.func @_resident_kernel(%arg0: i32, %arg1: memref<8x128xf32, #tpu.memory_space<vmem>>, %arg2: memref<3x128x128xbf16, #tpu.memory_space<vmem>>, %arg3: memref<3x1x128xf32, #tpu.memory_space<vmem>>, %arg4: memref<3x1x128xf32, #tpu.memory_space<vmem>>, %arg5: memref<3x1x128xf32, #tpu.memory_space<vmem>>, %arg6: memref<8x128xf32, #tpu.memory_space<vmem>>) attributes {dimension_semantics = [#tpu.dimension_semantics<parallel>], iteration_bounds = array<i64: 2>, scalar_prefetch = 0 : i64, scratch_operands = 0 : i64, tpu.core_type = #tpu.core_type<tc>, window_params = [{transform_indices = @transform_0, window_bounds = array<i64: 8, 128>}, {pipeline_mode = #tpu.pipeline_mode<synchronous>, transform_indices = @transform_1, window_bounds = array<i64: 3, 128, 128>}, {pipeline_mode = #tpu.pipeline_mode<synchronous>, transform_indices = @transform_2, window_bounds = array<i64: 3, 1, 128>}, {pipeline_mode = #tpu.pipeline_mode<synchronous>, transform_indices = @transform_3, window_bounds = array<i64: 3, 1, 128>}, {pipeline_mode = #tpu.pipeline_mode<synchronous>, transform_indices = @transform_4, window_bounds = array<i64: 3, 1, 128>}, {transform_indices = @transform_5, window_bounds = array<i64: 8, 128>}]} {
    %c0 = arith.constant 0 : index
    %c0_0 = arith.constant 0 : index
    %0 = vector.load %arg1[%c0, %c0_0] : memref<8x128xf32, #tpu.memory_space<vmem>>, vector<8x128xf32>
    %c0_1 = arith.constant 0 : index
    %c0_2 = arith.constant 0 : index
    %c0_3 = arith.constant 0 : index
    %1 = vector.load %arg2[%c0_1, %c0_2, %c0_3] : memref<3x128x128xbf16, #tpu.memory_space<vmem>>, vector<1x128x128xbf16>
    %2 = vector.shape_cast %1 : vector<1x128x128xbf16> to vector<128x128xbf16>
    %c0_4 = arith.constant 0 : index
    %c0_5 = arith.constant 0 : index
    %c0_6 = arith.constant 0 : index
    %3 = vector.load %arg3[%c0_4, %c0_5, %c0_6] : memref<3x1x128xf32, #tpu.memory_space<vmem>>, vector<1x1x128xf32>
    %4 = vector.shape_cast %3 : vector<1x1x128xf32> to vector<1x128xf32>
    %c0_7 = arith.constant 0 : index
    %c0_8 = arith.constant 0 : index
    %c0_9 = arith.constant 0 : index
    %5 = vector.load %arg4[%c0_7, %c0_8, %c0_9] : memref<3x1x128xf32, #tpu.memory_space<vmem>>, vector<1x1x128xf32>
    %6 = vector.shape_cast %5 : vector<1x1x128xf32> to vector<1x128xf32>
    %c0_10 = arith.constant 0 : index
    %c0_11 = arith.constant 0 : index
    %c0_12 = arith.constant 0 : index
    %7 = vector.load %arg5[%c0_10, %c0_11, %c0_12] : memref<3x1x128xf32, #tpu.memory_space<vmem>>, vector<1x1x128xf32>
    %8 = vector.shape_cast %7 : vector<1x1x128xf32> to vector<1x128xf32>
    %cst = arith.constant dense<0.000000e+00> : vector<8xf32>
    %9 = vector.multi_reduction <add>, %0, %cst [1] : vector<8x128xf32> to vector<8xf32>
    %10 = vector.shape_cast %9 : vector<8xf32> to vector<8x1xf32>
    %cst_13 = arith.constant 3.125000e-02 : f32
    %11 = vector.broadcast %cst_13 : f32 to vector<8x1xf32>
    %12 = arith.mulf %10, %11 : vector<8x1xf32>
    %13 = arith.mulf %0, %0 : vector<8x128xf32>
    %cst_14 = arith.constant dense<0.000000e+00> : vector<8xf32>
    %14 = vector.multi_reduction <add>, %13, %cst_14 [1] : vector<8x128xf32> to vector<8xf32>
    %15 = vector.shape_cast %14 : vector<8xf32> to vector<8x1xf32>
    %cst_15 = arith.constant 3.125000e-02 : f32
    %16 = vector.broadcast %cst_15 : f32 to vector<8x1xf32>
    %17 = arith.mulf %15, %16 : vector<8x1xf32>
    %18 = arith.mulf %12, %12 : vector<8x1xf32>
    %19 = arith.subf %17, %18 : vector<8x1xf32>
    %cst_16 = arith.constant 0.000000e+00 : f32
    %20 = vector.broadcast %cst_16 : f32 to vector<8x1xf32>
    %21 = arith.maximumf %19, %20 : vector<8x1xf32>
    %22 = vector.broadcast %12 : vector<8x1xf32> to vector<8x128xf32>
    %23 = arith.subf %0, %22 : vector<8x128xf32>
    %cst_17 = arith.constant 9.99999974E-6 : f32
    %24 = vector.broadcast %cst_17 : f32 to vector<8x1xf32>
    %25 = arith.addf %21, %24 : vector<8x1xf32>
    %26 = math.rsqrt %25 : vector<8x1xf32>
    %27 = vector.broadcast %26 : vector<8x1xf32> to vector<8x128xf32>
    %28 = arith.mulf %23, %27 : vector<8x128xf32>
    %29 = vector.broadcast %6 : vector<1x128xf32> to vector<8x128xf32>
    %30 = arith.mulf %28, %29 : vector<8x128xf32>
    %31 = vector.broadcast %8 : vector<1x128xf32> to vector<8x128xf32>
    %32 = arith.addf %30, %31 : vector<8x128xf32>
    %33 = arith.truncf %32 : vector<8x128xf32> to vector<8x128xbf16>
    %cst_18 = arith.constant dense<0.000000e+00> : vector<8x128xf32>
    %34 = tpu.matmul %33, %2, %cst_18 {dimension_numbers = #tpu.dot_dimension_numbers<[1], [0], [0], [1], [0, 0, 1, 1], [], []>} : vector<8x128xbf16>, vector<128x128xbf16>, vector<8x128xf32> -> vector<8x128xf32>
    %35 = vector.broadcast %4 : vector<1x128xf32> to vector<8x128xf32>
    %36 = arith.addf %34, %35 : vector<8x128xf32>
    %cst_19 = arith.constant 0.000000e+00 : f32
    %37 = vector.broadcast %cst_19 : f32 to vector<8x128xf32>
    %38 = arith.maximumf %36, %37 : vector<8x128xf32>
    %39 = arith.addf %38, %0 : vector<8x128xf32>
    %c1 = arith.constant 1 : index
    %c0_20 = arith.constant 0 : index
    %c0_21 = arith.constant 0 : index
    %40 = vector.load %arg2[%c1, %c0_20, %c0_21] : memref<3x128x128xbf16, #tpu.memory_space<vmem>>, vector<1x128x128xbf16>
    %41 = vector.shape_cast %40 : vector<1x128x128xbf16> to vector<128x128xbf16>
    %c1_22 = arith.constant 1 : index
    %c0_23 = arith.constant 0 : index
    %c0_24 = arith.constant 0 : index
    %42 = vector.load %arg3[%c1_22, %c0_23, %c0_24] : memref<3x1x128xf32, #tpu.memory_space<vmem>>, vector<1x1x128xf32>
    %43 = vector.shape_cast %42 : vector<1x1x128xf32> to vector<1x128xf32>
    %c1_25 = arith.constant 1 : index
    %c0_26 = arith.constant 0 : index
    %c0_27 = arith.constant 0 : index
    %44 = vector.load %arg4[%c1_25, %c0_26, %c0_27] : memref<3x1x128xf32, #tpu.memory_space<vmem>>, vector<1x1x128xf32>
    %45 = vector.shape_cast %44 : vector<1x1x128xf32> to vector<1x128xf32>
    %c1_28 = arith.constant 1 : index
    %c0_29 = arith.constant 0 : index
    %c0_30 = arith.constant 0 : index
    %46 = vector.load %arg5[%c1_28, %c0_29, %c0_30] : memref<3x1x128xf32, #tpu.memory_space<vmem>>, vector<1x1x128xf32>
    %47 = vector.shape_cast %46 : vector<1x1x128xf32> to vector<1x128xf32>
    %cst_31 = arith.constant dense<0.000000e+00> : vector<8xf32>
    %48 = vector.multi_reduction <add>, %39, %cst_31 [1] : vector<8x128xf32> to vector<8xf32>
    %49 = vector.shape_cast %48 : vector<8xf32> to vector<8x1xf32>
    %cst_32 = arith.constant 3.125000e-02 : f32
    %50 = vector.broadcast %cst_32 : f32 to vector<8x1xf32>
    %51 = arith.mulf %49, %50 : vector<8x1xf32>
    %52 = arith.mulf %39, %39 : vector<8x128xf32>
    %cst_33 = arith.constant dense<0.000000e+00> : vector<8xf32>
    %53 = vector.multi_reduction <add>, %52, %cst_33 [1] : vector<8x128xf32> to vector<8xf32>
    %54 = vector.shape_cast %53 : vector<8xf32> to vector<8x1xf32>
    %cst_34 = arith.constant 3.125000e-02 : f32
    %55 = vector.broadcast %cst_34 : f32 to vector<8x1xf32>
    %56 = arith.mulf %54, %55 : vector<8x1xf32>
    %57 = arith.mulf %51, %51 : vector<8x1xf32>
    %58 = arith.subf %56, %57 : vector<8x1xf32>
    %cst_35 = arith.constant 0.000000e+00 : f32
    %59 = vector.broadcast %cst_35 : f32 to vector<8x1xf32>
    %60 = arith.maximumf %58, %59 : vector<8x1xf32>
    %61 = vector.broadcast %51 : vector<8x1xf32> to vector<8x128xf32>
    %62 = arith.subf %39, %61 : vector<8x128xf32>
    %cst_36 = arith.constant 9.99999974E-6 : f32
    %63 = vector.broadcast %cst_36 : f32 to vector<8x1xf32>
    %64 = arith.addf %60, %63 : vector<8x1xf32>
    %65 = math.rsqrt %64 : vector<8x1xf32>
    %66 = vector.broadcast %65 : vector<8x1xf32> to vector<8x128xf32>
    %67 = arith.mulf %62, %66 : vector<8x128xf32>
    %68 = vector.broadcast %45 : vector<1x128xf32> to vector<8x128xf32>
    %69 = arith.mulf %67, %68 : vector<8x128xf32>
    %70 = vector.broadcast %47 : vector<1x128xf32> to vector<8x128xf32>
    %71 = arith.addf %69, %70 : vector<8x128xf32>
    %72 = arith.truncf %71 : vector<8x128xf32> to vector<8x128xbf16>
    %cst_37 = arith.constant dense<0.000000e+00> : vector<8x128xf32>
    %73 = tpu.matmul %72, %41, %cst_37 {dimension_numbers = #tpu.dot_dimension_numbers<[1], [0], [0], [1], [0, 0, 1, 1], [], []>} : vector<8x128xbf16>, vector<128x128xbf16>, vector<8x128xf32> -> vector<8x128xf32>
    %74 = vector.broadcast %43 : vector<1x128xf32> to vector<8x128xf32>
    %75 = arith.addf %73, %74 : vector<8x128xf32>
    %cst_38 = arith.constant 0.000000e+00 : f32
    %76 = vector.broadcast %cst_38 : f32 to vector<8x128xf32>
    %77 = arith.maximumf %75, %76 : vector<8x128xf32>
    %78 = arith.addf %77, %39 : vector<8x128xf32>
    %c2 = arith.constant 2 : index
    %c0_39 = arith.constant 0 : index
    %c0_40 = arith.constant 0 : index
    %79 = vector.load %arg2[%c2, %c0_39, %c0_40] : memref<3x128x128xbf16, #tpu.memory_space<vmem>>, vector<1x128x128xbf16>
    %80 = vector.shape_cast %79 : vector<1x128x128xbf16> to vector<128x128xbf16>
    %c2_41 = arith.constant 2 : index
    %c0_42 = arith.constant 0 : index
    %c0_43 = arith.constant 0 : index
    %81 = vector.load %arg3[%c2_41, %c0_42, %c0_43] : memref<3x1x128xf32, #tpu.memory_space<vmem>>, vector<1x1x128xf32>
    %82 = vector.shape_cast %81 : vector<1x1x128xf32> to vector<1x128xf32>
    %c2_44 = arith.constant 2 : index
    %c0_45 = arith.constant 0 : index
    %c0_46 = arith.constant 0 : index
    %83 = vector.load %arg4[%c2_44, %c0_45, %c0_46] : memref<3x1x128xf32, #tpu.memory_space<vmem>>, vector<1x1x128xf32>
    %84 = vector.shape_cast %83 : vector<1x1x128xf32> to vector<1x128xf32>
    %c2_47 = arith.constant 2 : index
    %c0_48 = arith.constant 0 : index
    %c0_49 = arith.constant 0 : index
    %85 = vector.load %arg5[%c2_47, %c0_48, %c0_49] : memref<3x1x128xf32, #tpu.memory_space<vmem>>, vector<1x1x128xf32>
    %86 = vector.shape_cast %85 : vector<1x1x128xf32> to vector<1x128xf32>
    %cst_50 = arith.constant dense<0.000000e+00> : vector<8xf32>
    %87 = vector.multi_reduction <add>, %78, %cst_50 [1] : vector<8x128xf32> to vector<8xf32>
    %88 = vector.shape_cast %87 : vector<8xf32> to vector<8x1xf32>
    %cst_51 = arith.constant 3.125000e-02 : f32
    %89 = vector.broadcast %cst_51 : f32 to vector<8x1xf32>
    %90 = arith.mulf %88, %89 : vector<8x1xf32>
    %91 = arith.mulf %78, %78 : vector<8x128xf32>
    %cst_52 = arith.constant dense<0.000000e+00> : vector<8xf32>
    %92 = vector.multi_reduction <add>, %91, %cst_52 [1] : vector<8x128xf32> to vector<8xf32>
    %93 = vector.shape_cast %92 : vector<8xf32> to vector<8x1xf32>
    %cst_53 = arith.constant 3.125000e-02 : f32
    %94 = vector.broadcast %cst_53 : f32 to vector<8x1xf32>
    %95 = arith.mulf %93, %94 : vector<8x1xf32>
    %96 = arith.mulf %90, %90 : vector<8x1xf32>
    %97 = arith.subf %95, %96 : vector<8x1xf32>
    %cst_54 = arith.constant 0.000000e+00 : f32
    %98 = vector.broadcast %cst_54 : f32 to vector<8x1xf32>
    %99 = arith.maximumf %97, %98 : vector<8x1xf32>
    %100 = vector.broadcast %90 : vector<8x1xf32> to vector<8x128xf32>
    %101 = arith.subf %78, %100 : vector<8x128xf32>
    %cst_55 = arith.constant 9.99999974E-6 : f32
    %102 = vector.broadcast %cst_55 : f32 to vector<8x1xf32>
    %103 = arith.addf %99, %102 : vector<8x1xf32>
    %104 = math.rsqrt %103 : vector<8x1xf32>
    %105 = vector.broadcast %104 : vector<8x1xf32> to vector<8x128xf32>
    %106 = arith.mulf %101, %105 : vector<8x128xf32>
    %107 = vector.broadcast %84 : vector<1x128xf32> to vector<8x128xf32>
    %108 = arith.mulf %106, %107 : vector<8x128xf32>
    %109 = vector.broadcast %86 : vector<1x128xf32> to vector<8x128xf32>
    %110 = arith.addf %108, %109 : vector<8x128xf32>
    %111 = arith.truncf %110 : vector<8x128xf32> to vector<8x128xbf16>
    %cst_56 = arith.constant dense<0.000000e+00> : vector<8x128xf32>
    %112 = tpu.matmul %111, %80, %cst_56 {dimension_numbers = #tpu.dot_dimension_numbers<[1], [0], [0], [1], [0, 0, 1, 1], [], []>} : vector<8x128xbf16>, vector<128x128xbf16>, vector<8x128xf32> -> vector<8x128xf32>
    %113 = vector.broadcast %82 : vector<1x128xf32> to vector<8x128xf32>
    %114 = arith.addf %112, %113 : vector<8x128xf32>
    %cst_57 = arith.constant 0.000000e+00 : f32
    %115 = vector.broadcast %cst_57 : f32 to vector<8x128xf32>
    %116 = arith.maximumf %114, %115 : vector<8x128xf32>
    %117 = arith.addf %116, %78 : vector<8x128xf32>
    %c0_58 = arith.constant 0 : index
    %c0_59 = arith.constant 0 : index
    %118 = vector.load %arg6[%c0_58, %c0_59] : memref<8x128xf32, #tpu.memory_space<vmem>>, vector<8x128xf32>
    tpu.vector_store %arg6[%c0_58, %c0_59], %117 {strides = array<i32>} : memref<8x128xf32, #tpu.memory_space<vmem>>, vector<8x128xf32>,
    return
  }
  func.func @transform_0(%arg0: i32) -> (i32, i32) {
    %c0_i32 = arith.constant 0 : i32
    %c0_i32_0 = arith.constant 0 : i32
    return %arg0, %c0_i32 : i32, i32
  }
  func.func @transform_1(%arg0: i32) -> (i32, i32, i32) {
    %c0_i32 = arith.constant 0 : i32
    %c0_i32_0 = arith.constant 0 : i32
    %c0_i32_1 = arith.constant 0 : i32
    %c0_i32_2 = arith.constant 0 : i32
    return %c0_i32, %c0_i32_0, %c0_i32_1 : i32, i32, i32
  }
  func.func @transform_2(%arg0: i32) -> (i32, i32, i32) {
    %c0_i32 = arith.constant 0 : i32
    %c0_i32_0 = arith.constant 0 : i32
    %c0_i32_1 = arith.constant 0 : i32
    %c0_i32_2 = arith.constant 0 : i32
    return %c0_i32, %c0_i32_0, %c0_i32_1 : i32, i32, i32
  }
  func.func @transform_3(%arg0: i32) -> (i32, i32, i32) {
    %c0_i32 = arith.constant 0 : i32
    %c0_i32_0 = arith.constant 0 : i32
    %c0_i32_1 = arith.constant 0 : i32
    %c0_i32_2 = arith.constant 0 : i32
    return %c0_i32, %c0_i32_0, %c0_i32_1 : i32, i32, i32
  }
  func.func @transform_4(%arg0: i32) -> (i32, i32, i32) {
    %c0_i32 = arith.constant 0 : i32
    %c0_i32_0 = arith.constant 0 : i32
    %c0_i32_1 = arith.constant 0 : i32
    %c0_i32_2 = arith.constant 0 : i32
    return %c0_i32, %c0_i32_0, %c0_i32_1 : i32, i32, i32
  }
  func.func @transform_5(%arg0: i32) -> (i32, i32) {
    %c0_i32 = arith.constant 0 : i32
    %c0_i32_0 = arith.constant 0 : i32
    return %arg0, %c0_i32 : i32, i32
  }
}

</mosaic_0001>

<llo_original>
// kernel: skip_connection_forward.1
$region0: #{skip_connection_forward.1}
  #allocation0 [shape = 'u32[]', space=smem, size = 0x4, offset = 0x4, fixed_abs, tag = 'smem constant byte address 0x4 - core index']
  #allocation1 [shape = 'u32[144,128]{1,0:T(1,128)}', space=vmem, size = 0x12000, scoped, tag = 'internal scratch']
  %s0 = inlined_call_operand.vmem [shape: f32[16,128], index: 0, kind: input, shape index: {}]
  %s1 = inlined_call_operand.hbm [shape: bf16[3,128,128], index: 1, kind: input, shape index: {}]
  %s2 = inlined_call_operand.vmem [shape: f32[3,1,128], index: 2, kind: input, shape index: {}]
  %s3 = inlined_call_operand.vmem [shape: f32[3,1,128], index: 3, kind: input, shape index: {}]
  %s4 = inlined_call_operand.vmem [shape: f32[3,1,128], index: 4, kind: input, shape index: {}]
  %s5 = inlined_call_operand.vmem [shape: f32[16,128], index: 5, kind: output, shape index: {}]
  %s6 = sld [smem:[#allocation0]]
  $region57: #{skip_connection_forward.1} parent=0
    _
  %s8 = ssub.s32 1, %s6
  %s9 = scalar_select 0, %s8, %s6
  $region1: #{skip_connection_forward.1} parent=0
    #allocation2 [shape = 'u8[98304]{0}', space=vmem, size = 0x18000, scoped, tag = 'input window, operand 1, single buffered']
    #allocation3 [shape = 's32[2]{0}', space=sflag, size = 0x8, scoped, tag = 'scoped memory for skip_connection_forward.1']
    %10 = vsyncpa [#allocation3], 0
    loop: start=0, step=1, limit=4
    $region2: #{skip_connection_forward.1} parent=1 // loop_pre_header
      _
    $region3: #{skip_connection_forward.1} parent=1 // loop_header
      %s12 = sphi 0, %s16
      %p13 = scmp.ge.s32.totalorder %s12, 4
      %s22 = sphi 0, %s24
      %s25 = sphi 0, %s22
      %s26 = sphi 0, %s25
      %s42 = sphi 0, %s26
      %s46 = sphi 0, %s46
      %s48 = sphi 0, %s46
      %s49 = sphi 0, %s48
      %s63 = sphi 0, %s49
      %s67 = sphi 0, %s67
      %s69 = sphi 0, %s67
      %s70 = sphi 0, %s69
      %s84 = sphi 0, %s70
      %s88 = sphi 0, %s88
      %s90 = sphi 0, %s88
      %s91 = sphi 0, %s90
      %s105 = sphi 0, %s91
      %s109 = sphi 0, %s109
      %s111 = sphi 0, %s109
      %s112 = sphi 0, %s111
      %s126 = sphi 0, %s112
      %s132 = sphi 0, %s134
      %s135 = sphi 0, %s132
      %s136 = sphi 0, %s135
      %s152 = sphi 0, %s136
    $region4: #{skip_connection_forward.1} parent=1 // loop_header_branch
      %15 = sbr.rel (%p13) target = $region8
    $region5: #{skip_connection_forward.1} parent=1 // loop_body
      %s17 = ssub.s32 %s12, 1
      %s18 = ssub.s32 %s12, 2
      %s19 = sadd.s32 %s12, 1
      %s20 = ssub.s32 %s12, %s19
      %p21 = scmp.eq.s32.totalorder %s20, 0
      %s23 = sadd.s32 %s22, 1
      %s24 = scalar_select %p21, %s22, %s23
      %p27 = pneg %p21
      %p28 = scmp.eq.s32.totalorder %s12, 1
      %p29 = por %p27, %p28
      %p30 = scmp.ne.s32.totalorder %s22, %s25
      %p31 = scmp.eq.s32.totalorder %s12, 0
      %p32 = por %p30, %p31
      %p33 = scmp.ne.s32.totalorder %s22, %s25
      %p34 = scmp.eq.s32.totalorder %s17, 1
      %p35 = por %p33, %p34
      %p36 = scmp.ne.s32.totalorder %s25, %s26
      %p37 = scmp.eq.s32.totalorder %s17, 0
      %p38 = por %p36, %p37
      %p39 = scmp.ne.s32.totalorder %s25, %s26
      %p40 = scmp.eq.s32.totalorder %s18, 1
      %p41 = por %p39, %p40
      %p43 = scmp.ne.s32.totalorder %s26, %s42
      %p44 = scmp.eq.s32.totalorder %s18, 0
      %p45 = por %p43, %p44
      %s47 = sadd.s32 %s46, 1
      %p50 = scmp.eq.s32.totalorder %s12, 1
      %p51 = scmp.ne.s32.totalorder %s46, %s48
      %p52 = scmp.eq.s32.totalorder %s12, 0
      %p53 = por %p51, %p52
      %p54 = scmp.ne.s32.totalorder %s46, %s48
      %p55 = scmp.eq.s32.totalorder %s17, 1
      %p56 = por %p54, %p55
      %p57 = scmp.ne.s32.totalorder %s48, %s49
      %p58 = scmp.eq.s32.totalorder %s17, 0
      %p59 = por %p57, %p58
      %p60 = scmp.ne.s32.totalorder %s48, %s49
      %p61 = scmp.eq.s32.totalorder %s18, 1
      %p62 = por %p60, %p61
      %p64 = scmp.ne.s32.totalorder %s49, %s63
      %p65 = scmp.eq.s32.totalorder %s18, 0
      %p66 = por %p64, %p65
      %s68 = sadd.s32 %s67, 1
      %p71 = scmp.eq.s32.totalorder %s12, 1
      %p72 = scmp.ne.s32.totalorder %s67, %s69
      %p73 = scmp.eq.s32.totalorder %s12, 0
      %p74 = por %p72, %p73
      %p75 = scmp.ne.s32.totalorder %s67, %s69
      %p76 = scmp.eq.s32.totalorder %s17, 1
      %p77 = por %p75, %p76
      %p78 = scmp.ne.s32.totalorder %s69, %s70
      %p79 = scmp.eq.s32.totalorder %s17, 0
      %p80 = por %p78, %p79
      %p81 = scmp.ne.s32.totalorder %s69, %s70
      %p82 = scmp.eq.s32.totalorder %s18, 1
      %p83 = por %p81, %p82
      %p85 = scmp.ne.s32.totalorder %s70, %s84
      %p86 = scmp.eq.s32.totalorder %s18, 0
      %p87 = por %p85, %p86
      %s89 = sadd.s32 %s88, 1
      %p92 = scmp.eq.s32.totalorder %s12, 1
      %p93 = scmp.ne.s32.totalorder %s88, %s90
      %p94 = scmp.eq.s32.totalorder %s12, 0
      %p95 = por %p93, %p94
      %p96 = scmp.ne.s32.totalorder %s88, %s90
      %p97 = scmp.eq.s32.totalorder %s17, 1
      %p98 = por %p96, %p97
      %p99 = scmp.ne.s32.totalorder %s90, %s91
      %p100 = scmp.eq.s32.totalorder %s17, 0
      %p101 = por %p99, %p100
      %p102 = scmp.ne.s32.totalorder %s90, %s91
      %p103 = scmp.eq.s32.totalorder %s18, 1
      %p104 = por %p102, %p103
      %p106 = scmp.ne.s32.totalorder %s91, %s105
      %p107 = scmp.eq.s32.totalorder %s18, 0
      %p108 = por %p106, %p107
      %s110 = sadd.s32 %s109, 1
      %p113 = scmp.eq.s32.totalorder %s12, 1
      %p114 = scmp.ne.s32.totalorder %s109, %s111
      %p115 = scmp.eq.s32.totalorder %s12, 0
      %p116 = por %p114, %p115
      %p117 = scmp.ne.s32.totalorder %s109, %s111
      %p118 = scmp.eq.s32.totalorder %s17, 1
      %p119 = por %p117, %p118
      %p120 = scmp.ne.s32.totalorder %s111, %s112
      %p121 = scmp.eq.s32.totalorder %s17, 0
      %p122 = por %p120, %p121
      %p123 = scmp.ne.s32.totalorder %s111, %s112
      %p124 = scmp.eq.s32.totalorder %s18, 1
      %p125 = por %p123, %p124
      %p127 = scmp.ne.s32.totalorder %s112, %s126
      %p128 = scmp.eq.s32.totalorder %s18, 0
      %p129 = por %p127, %p128
      %s130 = ssub.s32 %s12, %s19
      %p131 = scmp.eq.s32.totalorder %s130, 0
      %s133 = sadd.s32 %s132, 1
      %s134 = scalar_select %p131, %s132, %s133
      %p137 = pneg %p131
      %p138 = scmp.eq.s32.totalorder %s12, 1
      %p139 = por %p137, %p138
      %p140 = scmp.ne.s32.totalorder %s132, %s135
      %p141 = scmp.eq.s32.totalorder %s12, 0
      %p142 = por %p140, %p141
      %p143 = scmp.ne.s32.totalorder %s132, %s135
      %p144 = scmp.eq.s32.totalorder %s17, 1
      %p145 = por %p143, %p144
      %p146 = scmp.ne.s32.totalorder %s135, %s136
      %p147 = scmp.eq.s32.totalorder %s17, 0
      %p148 = por %p146, %p147
      %p149 = scmp.ne.s32.totalorder %s135, %s136
      %p150 = scmp.eq.s32.totalorder %s18, 1
      %p151 = por %p149, %p150
      %p153 = scmp.ne.s32.totalorder %s136, %s152
      %p154 = scmp.eq.s32.totalorder %s18, 0
      %p155 = por %p153, %p154
      %p156 = scmp.le.s32.totalorder 1, %s12
      %p157 = scmp.lt.s32.totalorder %s12, 3
      %p158 = pnand %p156, %p157
      %p159 = pneg %p158
      // Predicated region
      $region9: #{skip_connection_forward.1} parent=5 // pred_check
        _
      $region10: #{skip_connection_forward.1} parent=5 // pred_check_branch
        %161 = sbr.rel (%p158) target = $region12
      $region11: #{skip_connection_forward.1} parent=5 // pred_region
        %s162 = ssub.s32 %s12, 1
        // Predicated region
        $region13: #{skip_connection_forward.1} parent=11 // pred_check
          %p163 = pneg %p59
        $region14: #{skip_connection_forward.1} parent=11 // pred_check_branch
          %165 = sbr.rel (%p163) target = $region16
        $region15: #{skip_connection_forward.1} parent=11 // pred_region
          %s167 = ssub.s32 3072, 3072
          %168 = vsyncadd [#allocation3], %s167
          %s169 = sshll.u32 [#allocation2], 4
          %s170 = int_to_ptr.vmem [resolvable:$true] %s169
          %175 = dma.hbm_to_vmem [thread:$0]  %s1, 3072, %s170, [#allocation3], 64, 64, 4
        $region16: #{skip_connection_forward.1} parent=11 // pred_fallthru
          _
        // Predicated region
        $region17: #{skip_connection_forward.1} parent=11 // pred_check
          %p176 = pneg %p80
        $region18: #{skip_connection_forward.1} parent=11 // pred_check_branch
          %178 = sbr.rel (%p176) target = $region20
        $region19: #{skip_connection_forward.1} parent=11 // pred_region
          _
        $region20: #{skip_connection_forward.1} parent=11 // pred_fallthru
          _
        // Predicated region
        $region21: #{skip_connection_forward.1} parent=11 // pred_check
          %p179 = pneg %p101
        $region22: #{skip_connection_forward.1} parent=11 // pred_check_branch
          %181 = sbr.rel (%p179) target = $region24
        $region23: #{skip_connection_forward.1} parent=11 // pred_region
          _
        $region24: #{skip_connection_forward.1} parent=11 // pred_fallthru
          _
        // Predicated region
        $region25: #{skip_connection_forward.1} parent=11 // pred_check
          %p182 = pneg %p122
        $region26: #{skip_connection_forward.1} parent=11 // pred_check_branch
          %184 = sbr.rel (%p182) target = $region28
        $region27: #{skip_connection_forward.1} parent=11 // pred_region
          _
        $region28: #{skip_connection_forward.1} parent=11 // pred_fallthru
          _
      $region12: #{skip_connection_forward.1} parent=5 // pred_fallthru
        _
      %p185 = scmp.lt.s32.totalorder %s12, 2
      // Predicated region
      $region29: #{skip_connection_forward.1} parent=5 // pred_check
        %p186 = pneg %p185
      $region30: #{skip_connection_forward.1} parent=5 // pred_check_branch
        %188 = sbr.rel (%p186) target = $region32
      $region31: #{skip_connection_forward.1} parent=5 // pred_region
        // Predicated region
        $region33: #{skip_connection_forward.1} parent=31 // pred_check
          %p189 = pneg %p32
        $region34: #{skip_connection_forward.1} parent=31 // pred_check_branch
          %191 = sbr.rel (%p189) target = $region36
        $region35: #{skip_connection_forward.1} parent=31 // pred_region
          %p192 = scmp.lt.s32.totalorder %s12, 1
          %s193 = scalar_select %p192, %s12, 1
          %s194 = smul.addr %s193, 8
          %s195 = scalar_lea.vmem %s0, %s194
        $region36: #{skip_connection_forward.1} parent=31 // pred_fallthru
          _
      $region32: #{skip_connection_forward.1} parent=5 // pred_fallthru
        _
      %p196 = scmp.le.s32.totalorder 1, %s12
      %p197 = scmp.lt.s32.totalorder %s12, 3
      %p198 = pnand %p196, %p197
      %p199 = pneg %p198
      // Predicated region
      $region37: #{skip_connection_forward.1} parent=5 // pred_check
        _
      $region38: #{skip_connection_forward.1} parent=5 // pred_check_branch
        %201 = sbr.rel (%p198) target = $region40
      $region39: #{skip_connection_forward.1} parent=5 // pred_region
        %s202 = ssub.s32 %s12, 1
        // Predicated region
        $region41: #{skip_connection_forward.1} parent=39 // pred_check
          %p203 = pneg %p59
        $region42: #{skip_connection_forward.1} parent=39 // pred_check_branch
          %205 = sbr.rel (%p203) target = $region44
        $region43: #{skip_connection_forward.1} parent=39 // pred_region
          %206 = dma.done [#allocation3], 3072
        $region44: #{skip_connection_forward.1} parent=39 // pred_fallthru
          _
        %p207 = scmp.lt.s32.totalorder %s17, 1
        %s208 = scalar_select %p207, %s17, 1
        %s209 = smul.addr %s208, 8
        %s210 = scalar_lea.vmem %s0, %s209
        %p211 = pneg %p38
        %p212 = pneg %p35
        %p213 = pneg %p59
        %p214 = pneg %p56
        %p215 = pneg %p80
        %p216 = pneg %p77
        %p217 = pneg %p101
        %p218 = pneg %p98
        %p219 = pneg %p122
        %p220 = pneg %p119
        %p221 = pneg %p148
        %p222 = pneg %p145
        %p223 = scmp.lt.s32.totalorder %s17, 1
        %s224 = scalar_select %p223, %s17, 1
        %s225 = smul.addr %s224, 8
        %s226 = scalar_lea.vmem %s5, %s225
        %p227 = scmp.lt.s32.totalorder %s17, 1
        %s228 = scalar_select %p227, %s17, 1
        %s229 = smul.addr %s228, 8
        %s230 = scalar_lea.vmem %s0, %s229
        %p231 = scmp.lt.s32.totalorder %s17, 1
        %s232 = scalar_select %p231, %s17, 1
        %s233 = smul.addr %s232, 8
        %s234 = scalar_lea.vmem %s5, %s233
        %v236 = vld [vmem:[%s230] sm:$0xff]
        %v237 = vld [vmem:[#allocation2] sm:$0xf]
        %v238 = vld [vmem:[#allocation2 + $0x4] sm:$0xf]
        %v239 = vld [vmem:[#allocation2 + $0x8] sm:$0xf]
        %v240 = vld [vmem:[#allocation2 + $0xc] sm:$0xf]
        %v241 = vld [vmem:[#allocation2 + $0x10] sm:$0xf]
        %v242 = vld [vmem:[#allocation2 + $0x14] sm:$0xf]
        %v243 = vld [vmem:[#allocation2 + $0x18] sm:$0xf]
        %v244 = vld [vmem:[#allocation2 + $0x1c] sm:$0xf]
        %v245 = vld [vmem:[#allocation2 + $0x20] sm:$0xf]
        %v246 = vld [vmem:[#allocation2 + $0x24] sm:$0xf]
        %v247 = vld [vmem:[#allocation2 + $0x28] sm:$0xf]
        %v248 = vld [vmem:[#allocation2 + $0x2c] sm:$0xf]
        %v249 = vld [vmem:[#allocation2 + $0x30] sm:$0xf]
        %v250 = vld [vmem:[#allocation2 + $0x34] sm:$0xf]
        %v251 = vld [vmem:[#allocation2 + $0x38] sm:$0xf]
        %v252 = vld [vmem:[#allocation2 + $0x3c] sm:$0xf]
        %v253 = vld [vmem:[%s2] sm:$0x1]
        %v254 = vld [vmem:[%s3] sm:$0x1]
        %v255 = vld [vmem:[%s4] sm:$0x1]
        %256 = vadd.xlane.f32.xlu0 %v236
        %v257 = vpop.xlane.xlu0 %256
        %v258 = vmul.f32 %v257, 0.03125
        %v259 = vmul.f32 %v236, %v236
        %260 = vadd.xlane.f32.xlu0 %v259
        %v261 = vpop.xlane.xlu0 %260
        %v262 = vmul.f32 %v261, 0.03125
        %v263 = vmul.f32 %v258, %v258
        %v264 = vsub.f32 %v262, %v263
        %v265 = vmax.f32 %v264, 0.0
        %v266 = vsub.f32 %v236, %v258
        %v267 = vadd.f32 %v265, 1e-05
        %v268 = vrsqrt.pop %v267
        %v269 = vmul.f32 %v266, %v268
        %v271 = vlaneseq
        %v272 = vshrl.u32 %v271, 7
        %v273 = vsub.s32 0, %v272
        %v274 = vrot.slane %v254, %v273
        %v276 = vmul.f32 %v269, %v274
        %v278 = vlaneseq
        %v279 = vshrl.u32 %v278, 7
        %v280 = vsub.s32 0, %v279
        %v281 = vrot.slane %v255, %v280
        %v283 = vadd.f32 %v276, %v281
        %v284 = vpack.c.bf16 %v283, %v283
        %v286 = vlaneseq
        %v287 = vshrl.u32 %v286, 7
        %v288 = vsub.s32 0, %v287
        %v289 = vrot.slane %v253, %v288
        %v307 = vunpack.c.l.b16 %v237
        %v308 = vunpack.c.l.b16 %v238
        %v309 = vunpack.c.l.b16 %v239
        %v310 = vunpack.c.l.b16 %v240
        %v311 = vunpack.c.l.b16 %v241
        %v312 = vunpack.c.l.b16 %v242
        %v313 = vunpack.c.l.b16 %v243
        %v314 = vunpack.c.l.b16 %v244
        %v315 = vunpack.c.l.b16 %v245
        %v316 = vunpack.c.l.b16 %v246
        %v317 = vunpack.c.l.b16 %v247
        %v318 = vunpack.c.l.b16 %v248
        %v319 = vunpack.c.l.b16 %v249
        %v320 = vunpack.c.l.b16 %v250
        %v321 = vunpack.c.l.b16 %v251
        %v322 = vunpack.c.l.b16 %v252
        %v323 = vpack.c.b16 %v308, %v307
        %v324 = vpack.c.b16 %v310, %v309
        %v325 = vpack.c.b16 %v312, %v311
        %v326 = vpack.c.b16 %v314, %v313
        %v327 = vpack.c.b16 %v316, %v315
        %v328 = vpack.c.b16 %v318, %v317
        %v329 = vpack.c.b16 %v320, %v319
        %v330 = vpack.c.b16 %v322, %v321
        %339 = vmatprep.subr.bf16.mxu0 0
        %340 = vmatpush1.bf16.msra.mxu0 %v323
        %341 = vmatprep.subr.bf16.mxu0 0
        %342 = vmatpush1.bf16.msra.mxu0 %v324
        %343 = vmatprep.subr.bf16.mxu0 0
        %344 = vmatpush1.bf16.msra.mxu0 %v325
        %345 = vmatprep.subr.bf16.mxu0 0
        %346 = vmatpush1.bf16.msra.mxu0 %v326
        %347 = vmatprep.subr.bf16.mxu0 0
        %348 = vmatpush1.bf16.msra.mxu0 %v327
        %349 = vmatprep.subr.bf16.mxu0 0
        %350 = vmatpush1.bf16.msra.mxu0 %v328
        %351 = vmatprep.subr.bf16.mxu0 0
        %352 = vmatpush1.bf16.msra.mxu0 %v329
        %353 = vmatprep.subr.bf16.mxu0 0
        %354 = vmatpush1.bf16.msra.mxu0 %v330
        %355 = vmatprep.subr.bf16.mxu0 0
        %356 = vmatpush1.bf16.msra.mxu0 0
        %357 = vmatprep.subr.bf16.mxu0 0
        %358 = vmatpush1.bf16.msra.mxu0 0
        %359 = vmatprep.subr.bf16.mxu0 0
        %360 = vmatpush1.bf16.msra.mxu0 0
        %361 = vmatprep.subr.bf16.mxu0 0
        %362 = vmatpush1.bf16.msra.mxu0 0
        %363 = vmatprep.subr.bf16.mxu0 0
        %364 = vmatpush1.bf16.msra.mxu0 0
        %365 = vmatprep.subr.bf16.mxu0 0
        %366 = vmatpush1.bf16.msra.mxu0 0
        %367 = vmatprep.subr.bf16.mxu0 0
        %368 = vmatpush1.bf16.msra.mxu0 0
        %369 = vmatprep.subr.bf16.mxu0 0
        %370 = vmatpush1.bf16.msra.mxu0 0
        %371 = vmatprep.mubr.bf16.mxu0 0
        %372 = vmatmul.mubr.bf16.gmra.mrb[0].mxu0 %v284
        %v373 = vpop.f32.mrb[0].mxu0
        %v374 = vadd.f32 %v289, %v373
        %v375 = vpop.f32.mrb[0].mxu0
        %v376 = vpop.f32.mrb[0].mxu0
        %v377 = vpop.f32.mrb[0].mxu0
        %378 = vdwg.mxu0
        %v379 = vmax.f32 %v374, 0.0
        %v380 = vadd.f32 %v379, %v236
        %s381 = scalar_lea.vmem [#allocation2], 64
        %v382 = vld [vmem:[%s381] sm:$0xf]
        %v383 = vld [vmem:[%s381 + $0x4] sm:$0xf]
        %v384 = vld [vmem:[%s381 + $0x8] sm:$0xf]
        %v385 = vld [vmem:[%s381 + $0xc] sm:$0xf]
        %v386 = vld [vmem:[%s381 + $0x10] sm:$0xf]
        %v387 = vld [vmem:[%s381 + $0x14] sm:$0xf]
        %v388 = vld [vmem:[%s381 + $0x18] sm:$0xf]
        %v389 = vld [vmem:[%s381 + $0x1c] sm:$0xf]
        %v390 = vld [vmem:[%s381 + $0x20] sm:$0xf]
        %v391 = vld [vmem:[%s381 + $0x24] sm:$0xf]
        %v392 = vld [vmem:[%s381 + $0x28] sm:$0xf]
        %v393 = vld [vmem:[%s381 + $0x2c] sm:$0xf]
        %v394 = vld [vmem:[%s381 + $0x30] sm:$0xf]
        %v395 = vld [vmem:[%s381 + $0x34] sm:$0xf]
        %v396 = vld [vmem:[%s381 + $0x38] sm:$0xf]
        %v397 = vld [vmem:[%s381 + $0x3c] sm:$0xf]
        %s398 = scalar_lea.vmem %s2, 1
        %v399 = vld [vmem:[%s398] sm:$0x1]
        %s400 = scalar_lea.vmem %s3, 1
        %v401 = vld [vmem:[%s400] sm:$0x1]
        %s402 = scalar_lea.vmem %s4, 1
        %v403 = vld [vmem:[%s402] sm:$0x1]
        %404 = vadd.xlane.f32.xlu0 %v380
        %v405 = vpop.xlane.xlu0 %404
        %v406 = vmul.f32 %v405, 0.03125
        %v407 = vmul.f32 %v380, %v380
        %408 = vadd.xlane.f32.xlu0 %v407
        %v409 = vpop.xlane.xlu0 %408
        %v410 = vmul.f32 %v409, 0.03125
        %v411 = vmul.f32 %v406, %v406
        %v412 = vsub.f32 %v410, %v411
        %v413 = vmax.f32 %v412, 0.0
        %v414 = vsub.f32 %v380, %v406
        %v415 = vadd.f32 %v413, 1e-05
        %v416 = vrsqrt.pop %v415
        %v417 = vmul.f32 %v414, %v416
        %v419 = vlaneseq
        %v420 = vshrl.u32 %v419, 7
        %v421 = vsub.s32 0, %v420
        %v422 = vrot.slane %v401, %v421
        %v424 = vmul.f32 %v417, %v422
        %v426 = vlaneseq
        %v427 = vshrl.u32 %v426, 7
        %v428 = vsub.s32 0, %v427
        %v429 = vrot.slane %v403, %v428
        %v431 = vadd.f32 %v424, %v429
        %v432 = vpack.c.bf16 %v431, %v431
        %v434 = vlaneseq
        %v435 = vshrl.u32 %v434, 7
        %v436 = vsub.s32 0, %v435
        %v437 = vrot.slane %v399, %v436
        %v455 = vunpack.c.l.b16 %v382
        %v456 = vunpack.c.l.b16 %v383
        %v457 = vunpack.c.l.b16 %v384
        %v458 = vunpack.c.l.b16 %v385
        %v459 = vunpack.c.l.b16 %v386
        %v460 = vunpack.c.l.b16 %v387
        %v461 = vunpack.c.l.b16 %v388
        %v462 = vunpack.c.l.b16 %v389
        %v463 = vunpack.c.l.b16 %v390
        %v464 = vunpack.c.l.b16 %v391
        %v465 = vunpack.c.l.b16 %v392
        %v466 = vunpack.c.l.b16 %v393
        %v467 = vunpack.c.l.b16 %v394
        %v468 = vunpack.c.l.b16 %v395
        %v469 = vunpack.c.l.b16 %v396
        %v470 = vunpack.c.l.b16 %v397
        %v471 = vpack.c.b16 %v456, %v455
        %v472 = vpack.c.b16 %v458, %v457
        %v473 = vpack.c.b16 %v460, %v459
        %v474 = vpack.c.b16 %v462, %v461
        %v475 = vpack.c.b16 %v464, %v463
        %v476 = vpack.c.b16 %v466, %v465
        %v477 = vpack.c.b16 %v468, %v467
        %v478 = vpack.c.b16 %v470, %v469
        %487 = vmatprep.subr.bf16.mxu0 0
        %488 = vmatpush1.bf16.msra.mxu0 %v471
        %489 = vmatprep.subr.bf16.mxu0 0
        %490 = vmatpush1.bf16.msra.mxu0 %v472
        %491 = vmatprep.subr.bf16.mxu0 0
        %492 = vmatpush1.bf16.msra.mxu0 %v473
        %493 = vmatprep.subr.bf16.mxu0 0
        %494 = vmatpush1.bf16.msra.mxu0 %v474
        %495 = vmatprep.subr.bf16.mxu0 0
        %496 = vmatpush1.bf16.msra.mxu0 %v475
        %497 = vmatprep.subr.bf16.mxu0 0
        %498 = vmatpush1.bf16.msra.mxu0 %v476
        %499 = vmatprep.subr.bf16.mxu0 0
        %500 = vmatpush1.bf16.msra.mxu0 %v477
        %501 = vmatprep.subr.bf16.mxu0 0
        %502 = vmatpush1.bf16.msra.mxu0 %v478
        %503 = vmatprep.subr.bf16.mxu0 0
        %504 = vmatpush1.bf16.msra.mxu0 0
        %505 = vmatprep.subr.bf16.mxu0 0
        %506 = vmatpush1.bf16.msra.mxu0 0
        %507 = vmatprep.subr.bf16.mxu0 0
        %508 = vmatpush1.bf16.msra.mxu0 0
        %509 = vmatprep.subr.bf16.mxu0 0
        %510 = vmatpush1.bf16.msra.mxu0 0
        %511 = vmatprep.subr.bf16.mxu0 0
        %512 = vmatpush1.bf16.msra.mxu0 0
        %513 = vmatprep.subr.bf16.mxu0 0
        %514 = vmatpush1.bf16.msra.mxu0 0
        %515 = vmatprep.subr.bf16.mxu0 0
        %516 = vmatpush1.bf16.msra.mxu0 0
        %517 = vmatprep.subr.bf16.mxu0 0
        %518 = vmatpush1.bf16.msra.mxu0 0
        %519 = vmatprep.mubr.bf16.mxu0 0
        %520 = vmatmul.mubr.bf16.gmra.mrb[0].mxu0 %v432
        %v521 = vpop.f32.mrb[0].mxu0
        %v522 = vadd.f32 %v437, %v521
        %v523 = vpop.f32.mrb[0].mxu0
        %v524 = vpop.f32.mrb[0].mxu0
        %v525 = vpop.f32.mrb[0].mxu0
        %526 = vdwg.mxu0
        %v527 = vmax.f32 %v522, 0.0
        %v528 = vadd.f32 %v527, %v380
        %s529 = scalar_lea.vmem [#allocation2], 128
        %v530 = vld [vmem:[%s529] sm:$0xf]
        %v531 = vld [vmem:[%s529 + $0x4] sm:$0xf]
        %v532 = vld [vmem:[%s529 + $0x8] sm:$0xf]
        %v533 = vld [vmem:[%s529 + $0xc] sm:$0xf]
        %v534 = vld [vmem:[%s529 + $0x10] sm:$0xf]
        %v535 = vld [vmem:[%s529 + $0x14] sm:$0xf]
        %v536 = vld [vmem:[%s529 + $0x18] sm:$0xf]
        %v537 = vld [vmem:[%s529 + $0x1c] sm:$0xf]
        %v538 = vld [vmem:[%s529 + $0x20] sm:$0xf]
        %v539 = vld [vmem:[%s529 + $0x24] sm:$0xf]
        %v540 = vld [vmem:[%s529 + $0x28] sm:$0xf]
        %v541 = vld [vmem:[%s529 + $0x2c] sm:$0xf]
        %v542 = vld [vmem:[%s529 + $0x30] sm:$0xf]
        %v543 = vld [vmem:[%s529 + $0x34] sm:$0xf]
        %v544 = vld [vmem:[%s529 + $0x38] sm:$0xf]
        %v545 = vld [vmem:[%s529 + $0x3c] sm:$0xf]
        %s546 = scalar_lea.vmem %s2, 2
        %v547 = vld [vmem:[%s546] sm:$0x1]
        %s548 = scalar_lea.vmem %s3, 2
        %v549 = vld [vmem:[%s548] sm:$0x1]
        %s550 = scalar_lea.vmem %s4, 2
        %v551 = vld [vmem:[%s550] sm:$0x1]
        %552 = vadd.xlane.f32.xlu0 %v528
        %v553 = vpop.xlane.xlu0 %552
        %v554 = vmul.f32 %v553, 0.03125
        %v555 = vmul.f32 %v528, %v528
        %556 = vadd.xlane.f32.xlu0 %v555
        %v557 = vpop.xlane.xlu0 %556
        %v558 = vmul.f32 %v557, 0.03125
        %v559 = vmul.f32 %v554, %v554
        %v560 = vsub.f32 %v558, %v559
        %v561 = vmax.f32 %v560, 0.0
        %v562 = vsub.f32 %v528, %v554
        %v563 = vadd.f32 %v561, 1e-05
        %v564 = vrsqrt.pop %v563
        %v565 = vmul.f32 %v562, %v564
        %v567 = vlaneseq
        %v568 = vshrl.u32 %v567, 7
        %v569 = vsub.s32 0, %v568
        %v570 = vrot.slane %v549, %v569
        %v572 = vmul.f32 %v565, %v570
        %v574 = vlaneseq
        %v575 = vshrl.u32 %v574, 7
        %v576 = vsub.s32 0, %v575
        %v577 = vrot.slane %v551, %v576
        %v579 = vadd.f32 %v572, %v577
        %v580 = vpack.c.bf16 %v579, %v579
        %v582 = vlaneseq
        %v583 = vshrl.u32 %v582, 7
        %v584 = vsub.s32 0, %v583
        %v585 = vrot.slane %v547, %v584
        %v603 = vunpack.c.l.b16 %v530
        %v604 = vunpack.c.l.b16 %v531
        %v605 = vunpack.c.l.b16 %v532
        %v606 = vunpack.c.l.b16 %v533
        %v607 = vunpack.c.l.b16 %v534
        %v608 = vunpack.c.l.b16 %v535
        %v609 = vunpack.c.l.b16 %v536
        %v610 = vunpack.c.l.b16 %v537
        %v611 = vunpack.c.l.b16 %v538
        %v612 = vunpack.c.l.b16 %v539
        %v613 = vunpack.c.l.b16 %v540
        %v614 = vunpack.c.l.b16 %v541
        %v615 = vunpack.c.l.b16 %v542
        %v616 = vunpack.c.l.b16 %v543
        %v617 = vunpack.c.l.b16 %v544
        %v618 = vunpack.c.l.b16 %v545
        %v619 = vpack.c.b16 %v604, %v603
        %v620 = vpack.c.b16 %v606, %v605
        %v621 = vpack.c.b16 %v608, %v607
        %v622 = vpack.c.b16 %v610, %v609
        %v623 = vpack.c.b16 %v612, %v611
        %v624 = vpack.c.b16 %v614, %v613
        %v625 = vpack.c.b16 %v616, %v615
        %v626 = vpack.c.b16 %v618, %v617
        %635 = vmatprep.subr.bf16.mxu0 0
        %636 = vmatpush1.bf16.msra.mxu0 %v619
        %637 = vmatprep.subr.bf16.mxu0 0
        %638 = vmatpush1.bf16.msra.mxu0 %v620
        %639 = vmatprep.subr.bf16.mxu0 0
        %640 = vmatpush1.bf16.msra.mxu0 %v621
        %641 = vmatprep.subr.bf16.mxu0 0
        %642 = vmatpush1.bf16.msra.mxu0 %v622
        %643 = vmatprep.subr.bf16.mxu0 0
        %644 = vmatpush1.bf16.msra.mxu0 %v623
        %645 = vmatprep.subr.bf16.mxu0 0
        %646 = vmatpush1.bf16.msra.mxu0 %v624
        %647 = vmatprep.subr.bf16.mxu0 0
        %648 = vmatpush1.bf16.msra.mxu0 %v625
        %649 = vmatprep.subr.bf16.mxu0 0
        %650 = vmatpush1.bf16.msra.mxu0 %v626
        %651 = vmatprep.subr.bf16.mxu0 0
        %652 = vmatpush1.bf16.msra.mxu0 0
        %653 = vmatprep.subr.bf16.mxu0 0
        %654 = vmatpush1.bf16.msra.mxu0 0
        %655 = vmatprep.subr.bf16.mxu0 0
        %656 = vmatpush1.bf16.msra.mxu0 0
        %657 = vmatprep.subr.bf16.mxu0 0
        %658 = vmatpush1.bf16.msra.mxu0 0
        %659 = vmatprep.subr.bf16.mxu0 0
        %660 = vmatpush1.bf16.msra.mxu0 0
        %661 = vmatprep.subr.bf16.mxu0 0
        %662 = vmatpush1.bf16.msra.mxu0 0
        %663 = vmatprep.subr.bf16.mxu0 0
        %664 = vmatpush1.bf16.msra.mxu0 0
        %665 = vmatprep.subr.bf16.mxu0 0
        %666 = vmatpush1.bf16.msra.mxu0 0
        %667 = vmatprep.mubr.bf16.mxu0 0
        %668 = vmatmul.mubr.bf16.gmra.mrb[0].mxu0 %v580
        %v669 = vpop.f32.mrb[0].mxu0
        %v670 = vadd.f32 %v585, %v669
        %v671 = vpop.f32.mrb[0].mxu0
        %v672 = vpop.f32.mrb[0].mxu0
        %v673 = vpop.f32.mrb[0].mxu0
        %674 = vdwg.mxu0
        %v675 = vmax.f32 %v670, 0.0
        %v676 = vadd.f32 %v675, %v528
        %677 = vst [vmem:[%s234] sm:$0xff] %v676
        %p678 = scmp.lt.s32.totalorder %s17, 1
        %s679 = scalar_select %p678, %s17, 1
        %s680 = smul.addr %s679, 8
        %s681 = scalar_lea.vmem %s5, %s680
        // Predicated region
        $region45: #{skip_connection_forward.1} parent=39 // pred_check
          %p682 = pneg %p145
        $region46: #{skip_connection_forward.1} parent=39 // pred_check_branch
          %684 = sbr.rel (%p682) target = $region48
        $region47: #{skip_connection_forward.1} parent=39 // pred_region
          _
        $region48: #{skip_connection_forward.1} parent=39 // pred_fallthru
          _
      $region40: #{skip_connection_forward.1} parent=5 // pred_fallthru
        _
      %p685 = scmp.le.s32.totalorder 2, %s12
      // Predicated region
      $region49: #{skip_connection_forward.1} parent=5 // pred_check
        %p686 = pneg %p685
      $region50: #{skip_connection_forward.1} parent=5 // pred_check_branch
        %688 = sbr.rel (%p686) target = $region52
      $region51: #{skip_connection_forward.1} parent=5 // pred_region
        %s689 = ssub.s32 %s12, 2
        // Predicated region
        $region53: #{skip_connection_forward.1} parent=51 // pred_check
          %p690 = pneg %p151
        $region54: #{skip_connection_forward.1} parent=51 // pred_check_branch
          %692 = sbr.rel (%p690) target = $region56
        $region55: #{skip_connection_forward.1} parent=51 // pred_region
          %p693 = scmp.lt.s32.totalorder %s18, 1
          %s694 = scalar_select %p693, %s18, 1
          %s695 = smul.addr %s694, 8
          %s696 = scalar_lea.vmem %s5, %s695
        $region56: #{skip_connection_forward.1} parent=51 // pred_fallthru
          _
      $region52: #{skip_connection_forward.1} parent=5 // pred_fallthru
        _
    $region6: #{skip_connection_forward.1} parent=1 // loop_footer
      %s16 = sadd.s32 1, %s12
    $region7: #{skip_connection_forward.1} parent=1 // loop_footer_branch
      %11 = sbr.rel target = $region3
    $region8: #{skip_connection_forward.1} parent=1 // loop_exit
      _
    %697 = vsyncpa [#allocation3], 1
    %s698 = scalar_lea.sflag [#allocation3], 1
    %699 = vsyncpa %s698, 1

</llo_original>
